<compile_context>
chip_gen: v7x
topology: tpu7x:2x2x1
jax: 0.10.0
libtpu: 0.0.40
codegen_flags: <defaults>
</compile_context>

<pallas_src>
import functools

import jax
import jax.numpy as jnp
from jax.experimental import pallas as pl
from jax.experimental.pallas import tpu as pltpu


def _adapter_kernel(x_ref, w1_ref, w2_ref, mask_ref, nc_ref, nq_ref, cos_ref, *, d):
    """One batch tile.

    x_ref   : [TB, 2D]  (chunk | query concatenated on features)
    w1_ref  : [2D, 2L]  block-diag(w1_chunk, w1_query)   (resident)
    w2_ref  : [2L, 2D]  block-diag(w2_chunk, w2_query)   (resident)
    mask_ref: [TB, 2L]  inverted-dropout mask (already scaled by 1/(1-p))
    nc_ref  : [TB, D]   new_chunk
    nq_ref  : [TB, D]   new_query
    cos_ref : [1, TB]   cosine similarity (lane-dense)
    """
    x = x_ref[...].astype(jnp.float32)

    # project1 (both branches at once) -> dropout -> project2 (block-diag => no
    # cross terms between the chunk and query branches).
    h = jnp.dot(x, w1_ref[...].astype(jnp.float32),
                preferred_element_type=jnp.float32)                 # [TB, 2L]
    h = h * mask_ref[...]
    adapter = jnp.dot(h, w2_ref[...].astype(jnp.float32),
                      preferred_element_type=jnp.float32)           # [TB, 2D]

    new = x + adapter                                               # residual
    new_chunk = new[:, :d]
    new_query = new[:, d:]

    nc_ref[...] = new_chunk.astype(nc_ref.dtype)
    nq_ref[...] = new_query.astype(nq_ref.dtype)

    # Cosine similarity along features (torch default: dim=1, eps=1e-8).
    dot_xy = jnp.sum(new_chunk * new_query, axis=1, keepdims=True)  # [TB, 1]
    nx = jnp.sqrt(jnp.sum(new_chunk * new_chunk, axis=1, keepdims=True))
    ny = jnp.sqrt(jnp.sum(new_query * new_query, axis=1, keepdims=True))
    cos = dot_xy / jnp.maximum(nx * ny, 1e-8)                       # [TB, 1]
    cos_ref[...] = jnp.transpose(cos)                               # -> [1, TB]


def _pick_batch_tile(b):
    # Largest lane/sublane-friendly tile that divides B; else single block.
    for t in (512, 256, 128):
        if b % t == 0:
            return t
    return b


def dropout_mask(key, shape, p=0.5):
    """Pre-scaled inverted-dropout keep mask (F.dropout training semantics)."""
    if p <= 0.0:
        return jnp.ones(shape, jnp.float32)
    keep = jax.random.bernoulli(key, 1.0 - p, shape)
    return keep.astype(jnp.float32) / (1.0 - p)


def adapter_forward(chunk_batch, query_batch, w1c, w2c, w1q, w2q, mask=None):
    """Pallas implementation of Adapter.forward.

    Weights are pre-transposed PyTorch Linear weights:
      w1c, w1q : [D, L]   (chunk/query project1)
      w2c, w2q : [L, D]   (chunk/query project2, zero-initialized in the module)
    mask : [B, 2L] pre-scaled inverted-dropout mask (None => eval / no dropout).
    Returns (new_chunk [B, D], new_query [B, D], cosine_similarity [B]).
    """
    B, D = chunk_batch.shape
    L = w1c.shape[1]
    dtype = chunk_batch.dtype

    # Fused input and block-diagonal weights (built once in the XLA wrapper).
    x = jnp.concatenate([chunk_batch, query_batch], axis=1)          # [B, 2D]
    w1 = jnp.zeros((2 * D, 2 * L), jnp.float32)
    w1 = w1.at[:D, :L].set(w1c.astype(jnp.float32))
    w1 = w1.at[D:, L:].set(w1q.astype(jnp.float32))
    w2 = jnp.zeros((2 * L, 2 * D), jnp.float32)
    w2 = w2.at[:L, :D].set(w2c.astype(jnp.float32))
    w2 = w2.at[L:, D:].set(w2q.astype(jnp.float32))

    if mask is None:
        mask = jnp.ones((B, 2 * L), jnp.float32)

    tile_b = _pick_batch_tile(B)
    grid = (B // tile_b,)

    kernel = functools.partial(_adapter_kernel, d=D)

    new_chunk, new_query, cos = pl.pallas_call(
        kernel,
        grid=grid,
        in_specs=[
            pl.BlockSpec((tile_b, 2 * D), lambda i: (i, 0)),   # x tile
            pl.BlockSpec((2 * D, 2 * L), lambda i: (0, 0)),    # w1 (resident)
            pl.BlockSpec((2 * L, 2 * D), lambda i: (0, 0)),    # w2 (resident)
            pl.BlockSpec((tile_b, 2 * L), lambda i: (i, 0)),   # dropout mask tile
        ],
        out_specs=(
            pl.BlockSpec((tile_b, D), lambda i: (i, 0)),       # new_chunk
            pl.BlockSpec((tile_b, D), lambda i: (i, 0)),       # new_query
            pl.BlockSpec((1, tile_b), lambda i: (0, i)),       # cos (lane-dense)
        ),
        out_shape=(
            jax.ShapeDtypeStruct((B, D), dtype),
            jax.ShapeDtypeStruct((B, D), dtype),
            jax.ShapeDtypeStruct((1, B), jnp.float32),
        ),
        compiler_params=pltpu.CompilerParams(
            dimension_semantics=("parallel",),
            vmem_limit_bytes=48 * 1024 * 1024,   # safe on v5e/v6e (128 MiB) and v7x (64 MiB)
        ),
    )(x, w1, w2, mask)

    return new_chunk, new_query, cos[0]


def adapter_reference(chunk, query, w1c, w2c, w1q, w2q, mask):
    """Pure-JAX reference mirroring the PyTorch forward (with the same mask)."""
    L = w1c.shape[1]
    mc, mq = mask[:, :L], mask[:, L:]
    nc = chunk + ((chunk @ w1c) * mc) @ w2c
    nq = query + ((query @ w1q) * mq) @ w2q
    num = jnp.sum(nc * nq, axis=1)
    den = jnp.maximum(jnp.linalg.norm(nc, axis=1) * jnp.linalg.norm(nq, axis=1), 1e-8)
    return nc, nq, num / den


if __name__ == "__main__":
    in_dimension = 32
    latent_dim = 16
    B = 8

    key = jax.random.PRNGKey(0)
    k_chunk, k_query, k_w1c, k_w1q, k_w2, k_drop = jax.random.split(key, 6)

    chunk_batch = jax.random.normal(k_chunk, (B, in_dimension), dtype=jnp.float32)
    query_batch = jax.random.normal(k_query, (B, in_dimension), dtype=jnp.float32)

    # project1 weights: kaiming-uniform-style init, stored as [in, latent]
    # (PyTorch Linear weight [latent, in] pre-transposed for x @ W.T).
    bound1 = 1.0 / jnp.sqrt(in_dimension)
    w1c = jax.random.uniform(k_w1c, (in_dimension, latent_dim),
                             minval=-bound1, maxval=bound1, dtype=jnp.float32)
    w1q = jax.random.uniform(k_w1q, (in_dimension, latent_dim),
                             minval=-bound1, maxval=bound1, dtype=jnp.float32)
    # project2 weights are zero-initialized per Adapter.init_weights().
    w2c = jnp.zeros((latent_dim, in_dimension), dtype=jnp.float32)
    w2q = jnp.zeros((latent_dim, in_dimension), dtype=jnp.float32)

    mask = dropout_mask(k_drop, (B, 2 * latent_dim), p=0.5)

    new_chunk, new_query, cos_sim = adapter_forward(
        chunk_batch, query_batch, w1c, w2c, w1q, w2q, mask)
    jax.block_until_ready((new_chunk, new_query, cos_sim))

    assert new_chunk.shape == (B, in_dimension)
    assert new_query.shape == (B, in_dimension)
    assert cos_sim.shape == (B,)
    # project2 is zero-initialized -> adapter path is exactly the identity.
    assert jnp.allclose(new_chunk, chunk_batch, atol=1e-6)
    assert jnp.allclose(new_query, query_batch, atol=1e-6)

    # Cross-check the full math path with non-zero project2 weights.
    w2c_nz = 0.1 * jax.random.normal(k_w2, (latent_dim, in_dimension), dtype=jnp.float32)
    w2q_nz = 0.1 * jax.random.normal(jax.random.fold_in(k_w2, 1),
                                     (latent_dim, in_dimension), dtype=jnp.float32)
    nc2, nq2, cos2 = adapter_forward(
        chunk_batch, query_batch, w1c, w2c_nz, w1q, w2q_nz, mask)
    rc, rq, rcos = adapter_reference(
        chunk_batch, query_batch, w1c, w2c_nz, w1q, w2q_nz, mask)
    jax.block_until_ready((nc2, nq2, cos2))
    assert jnp.allclose(nc2, rc, atol=1e-5)
    assert jnp.allclose(nq2, rq, atol=1e-5)
    assert jnp.allclose(cos2, rcos, atol=1e-5)

    print("KERNEL_OK")
</pallas_src>

<mosaic_0001>
module attributes {stable_mosaic.version = 11 : i64} {
  func.func @_adapter_kernel(%arg0: i32, %arg1: memref<8x64xf32, #tpu.memory_space<vmem>>, %arg2: memref<64x32xf32, #tpu.memory_space<vmem>>, %arg3: memref<32x64xf32, #tpu.memory_space<vmem>>, %arg4: memref<8x32xf32, #tpu.memory_space<vmem>>, %arg5: memref<8x32xf32, #tpu.memory_space<vmem>>, %arg6: memref<8x32xf32, #tpu.memory_space<vmem>>, %arg7: memref<1x8xf32, #tpu.memory_space<vmem>>) attributes {dimension_semantics = [#tpu.dimension_semantics<parallel>], iteration_bounds = array<i64: 1>, scalar_prefetch = 0 : i64, scratch_operands = 0 : i64, tpu.core_type = #tpu.core_type<tc>, window_params = [{transform_indices = @transform_0, window_bounds = array<i64: 8, 64>}, {pipeline_mode = #tpu.pipeline_mode<synchronous>, transform_indices = @transform_1, window_bounds = array<i64: 64, 32>}, {pipeline_mode = #tpu.pipeline_mode<synchronous>, transform_indices = @transform_2, window_bounds = array<i64: 32, 64>}, {transform_indices = @transform_3, window_bounds = array<i64: 8, 32>}, {transform_indices = @transform_4, window_bounds = array<i64: 8, 32>}, {transform_indices = @transform_5, window_bounds = array<i64: 8, 32>}, {transform_indices = @transform_6, window_bounds = array<i64: 1, 8>}]} {
    %c0 = arith.constant 0 : index
    %c0_0 = arith.constant 0 : index
    %0 = vector.load %arg1[%c0, %c0_0] : memref<8x64xf32, #tpu.memory_space<vmem>>, vector<8x64xf32>
    %c0_1 = arith.constant 0 : index
    %c0_2 = arith.constant 0 : index
    %1 = vector.load %arg2[%c0_1, %c0_2] : memref<64x32xf32, #tpu.memory_space<vmem>>, vector<64x32xf32>
    %cst = arith.constant dense<0.000000e+00> : vector<8x32xf32>
    %2 = tpu.matmul %0, %1, %cst {dimension_numbers = #tpu.dot_dimension_numbers<[1], [0], [0], [1], [0, 0, 1, 1], [], []>} : vector<8x64xf32>, vector<64x32xf32>, vector<8x32xf32> -> vector<8x32xf32>
    %c0_3 = arith.constant 0 : index
    %c0_4 = arith.constant 0 : index
    %3 = vector.load %arg4[%c0_3, %c0_4] : memref<8x32xf32, #tpu.memory_space<vmem>>, vector<8x32xf32>
    %4 = arith.mulf %2, %3 : vector<8x32xf32>
    %c0_5 = arith.constant 0 : index
    %c0_6 = arith.constant 0 : index
    %5 = vector.load %arg3[%c0_5, %c0_6] : memref<32x64xf32, #tpu.memory_space<vmem>>, vector<32x64xf32>
    %cst_7 = arith.constant dense<0.000000e+00> : vector<8x64xf32>
    %6 = tpu.matmul %4, %5, %cst_7 {dimension_numbers = #tpu.dot_dimension_numbers<[1], [0], [0], [1], [0, 0, 1, 1], [], []>} : vector<8x32xf32>, vector<32x64xf32>, vector<8x64xf32> -> vector<8x64xf32>
    %7 = arith.addf %0, %6 : vector<8x64xf32>
    %8 = vector.extract_strided_slice %7 {offsets = [0, 0], sizes = [8, 32], strides = [1, 1]} : vector<8x64xf32> to vector<8x32xf32>
    %9 = vector.extract_strided_slice %7 {offsets = [0, 32], sizes = [8, 32], strides = [1, 1]} : vector<8x64xf32> to vector<8x32xf32>
    %c0_8 = arith.constant 0 : index
    %c0_9 = arith.constant 0 : index
    %10 = vector.load %arg5[%c0_8, %c0_9] : memref<8x32xf32, #tpu.memory_space<vmem>>, vector<8x32xf32>
    tpu.vector_store %arg5[%c0_8, %c0_9], %8 {strides = array<i32>} : memref<8x32xf32, #tpu.memory_space<vmem>>, vector<8x32xf32>,
    %c0_10 = arith.constant 0 : index
    %c0_11 = arith.constant 0 : index
    %11 = vector.load %arg6[%c0_10, %c0_11] : memref<8x32xf32, #tpu.memory_space<vmem>>, vector<8x32xf32>
    tpu.vector_store %arg6[%c0_10, %c0_11], %9 {strides = array<i32>} : memref<8x32xf32, #tpu.memory_space<vmem>>, vector<8x32xf32>,
    %12 = arith.mulf %8, %9 : vector<8x32xf32>
    %cst_12 = arith.constant dense<0.000000e+00> : vector<8xf32>
    %13 = vector.multi_reduction <add>, %12, %cst_12 [1] : vector<8x32xf32> to vector<8xf32>
    %14 = vector.shape_cast %13 : vector<8xf32> to vector<8x1xf32>
    %15 = arith.mulf %8, %8 : vector<8x32xf32>
    %cst_13 = arith.constant dense<0.000000e+00> : vector<8xf32>
    %16 = vector.multi_reduction <add>, %15, %cst_13 [1] : vector<8x32xf32> to vector<8xf32>
    %17 = vector.shape_cast %16 : vector<8xf32> to vector<8x1xf32>
    %18 = math.sqrt %17 : vector<8x1xf32>
    %19 = arith.mulf %9, %9 : vector<8x32xf32>
    %cst_14 = arith.constant dense<0.000000e+00> : vector<8xf32>
    %20 = vector.multi_reduction <add>, %19, %cst_14 [1] : vector<8x32xf32> to vector<8xf32>
    %21 = vector.shape_cast %20 : vector<8xf32> to vector<8x1xf32>
    %22 = math.sqrt %21 : vector<8x1xf32>
    %23 = arith.mulf %18, %22 : vector<8x1xf32>
    %cst_15 = arith.constant 9.99999993E-9 : f32
    %24 = vector.broadcast %cst_15 : f32 to vector<8x1xf32>
    %25 = arith.maximumf %23, %24 : vector<8x1xf32>
    %26 = arith.divf %14, %25 : vector<8x1xf32>
    %27 = tpu.transpose %26, [1, 0] : vector<8x1xf32> -> vector<1x8xf32>
    %c0_16 = arith.constant 0 : index
    %c0_17 = arith.constant 0 : index
    %28 = vector.load %arg7[%c0_16, %c0_17] : memref<1x8xf32, #tpu.memory_space<vmem>>, vector<1x8xf32>
    tpu.vector_store %arg7[%c0_16, %c0_17], %27 {strides = array<i32>} : memref<1x8xf32, #tpu.memory_space<vmem>>, vector<1x8xf32>,
    return
  }
  func.func @transform_0(%arg0: i32) -> (i32, i32) {
    %c0_i32 = arith.constant 0 : i32
    %c0_i32_0 = arith.constant 0 : i32
    return %arg0, %c0_i32 : i32, i32
  }
  func.func @transform_1(%arg0: i32) -> (i32, i32) {
    %c0_i32 = arith.constant 0 : i32
    %c0_i32_0 = arith.constant 0 : i32
    %c0_i32_1 = arith.constant 0 : i32
    return %c0_i32, %c0_i32_0 : i32, i32
  }
  func.func @transform_2(%arg0: i32) -> (i32, i32) {
    %c0_i32 = arith.constant 0 : i32
    %c0_i32_0 = arith.constant 0 : i32
    %c0_i32_1 = arith.constant 0 : i32
    return %c0_i32, %c0_i32_0 : i32, i32
  }
  func.func @transform_3(%arg0: i32) -> (i32, i32) {
    %c0_i32 = arith.constant 0 : i32
    %c0_i32_0 = arith.constant 0 : i32
    return %arg0, %c0_i32 : i32, i32
  }
  func.func @transform_4(%arg0: i32) -> (i32, i32) {
    %c0_i32 = arith.constant 0 : i32
    %c0_i32_0 = arith.constant 0 : i32
    return %arg0, %c0_i32 : i32, i32
  }
  func.func @transform_5(%arg0: i32) -> (i32, i32) {
    %c0_i32 = arith.constant 0 : i32
    %c0_i32_0 = arith.constant 0 : i32
    return %arg0, %c0_i32 : i32, i32
  }
  func.func @transform_6(%arg0: i32) -> (i32, i32) {
    %c0_i32 = arith.constant 0 : i32
    %c0_i32_0 = arith.constant 0 : i32
    return %c0_i32, %arg0 : i32, i32
  }
}

</mosaic_0001>

<llo_original>
// kernel: tpu_custom_call.1
$region0: #{tpu_custom_call.1}
  #allocation0 [shape = 'u32[]', space=smem, size = 0x4, offset = 0x4, fixed_abs, tag = 'smem constant byte address 0x4 - core index']
  #allocation1 [shape = 'u32[144,128]{1,0:T(1,128)}', space=vmem, size = 0x12000, scoped, tag = 'internal scratch']
  %s0 = inlined_call_operand.vmem [shape: f32[8,64], index: 0, kind: input, shape index: {}]
  %s1 = inlined_call_operand.vmem [shape: f32[64,32], index: 1, kind: input, shape index: {}]
  %s2 = inlined_call_operand.vmem [shape: f32[32,64], index: 2, kind: input, shape index: {}]
  %s3 = inlined_call_operand.vmem [shape: f32[8,32], index: 3, kind: input, shape index: {}]
  %s4 = inlined_call_operand.hbm [shape: f32[8,32], index: 4, kind: output, shape index: {0}]
  %s5 = inlined_call_operand.hbm [shape: f32[8,32], index: 5, kind: output, shape index: {1}]
  %s6 = inlined_call_operand.hbm [shape: f32[1,8], index: 6, kind: output, shape index: {2}]
  %7 = xla_tuple %s4, %s5, %s6
  %s8 = sld [smem:[#allocation0]]
  $region42: #{tpu_custom_call.1} parent=0
    _
  %s10 = ssub.s32 1, %s8
  %s11 = scalar_select 0, %s10, %s8
  $region1: #{tpu_custom_call.1} parent=0
    #allocation2 [shape = 'u8[4096]{0}', space=vmem, size = 0x1000, scoped, tag = 'output window, operand 0, single buffered']
    #allocation3 [shape = 's32[1]{0}', space=sflag, size = 0x4, scoped, tag = 'scoped memory for tpu_custom_call.1']
    #allocation4 [shape = 'u8[4096]{0}', space=vmem, size = 0x1000, scoped, tag = 'output window, operand 1, single buffered']
    #allocation5 [shape = 's32[1]{0}', space=sflag, size = 0x4, scoped, tag = 'scoped memory for tpu_custom_call.1']
    #allocation6 [shape = 'u8[512]{0}', space=vmem, size = 0x400, scoped, tag = 'output window, operand 2, single buffered']
    %12 = vsyncpa [#allocation3], 0
    %13 = vsyncpa [#allocation5], 0
    // Predicated region
    $region2: #{tpu_custom_call.1} parent=1 // pred_check
      _
    $region3: #{tpu_custom_call.1} parent=1 // pred_check_branch
      %15 = sbr.rel (0) target = $region5
    $region4: #{tpu_custom_call.1} parent=1 // pred_region
      _
    $region5: #{tpu_custom_call.1} parent=1 // pred_fallthru
      _
    // Predicated region
    $region6: #{tpu_custom_call.1} parent=1 // pred_check
      _
    $region7: #{tpu_custom_call.1} parent=1 // pred_check_branch
      %17 = sbr.rel (0) target = $region9
    $region8: #{tpu_custom_call.1} parent=1 // pred_region
      _
    $region9: #{tpu_custom_call.1} parent=1 // pred_fallthru
      _
    // Predicated region
    $region10: #{tpu_custom_call.1} parent=1 // pred_check
      _
    $region11: #{tpu_custom_call.1} parent=1 // pred_check_branch
      %19 = sbr.rel (0) target = $region13
    $region12: #{tpu_custom_call.1} parent=1 // pred_region
      _
    $region13: #{tpu_custom_call.1} parent=1 // pred_fallthru
      _
    // Predicated region
    $region14: #{tpu_custom_call.1} parent=1 // pred_check
      _
    $region15: #{tpu_custom_call.1} parent=1 // pred_check_branch
      %21 = sbr.rel (0) target = $region17
    $region16: #{tpu_custom_call.1} parent=1 // pred_region
      _
    $region17: #{tpu_custom_call.1} parent=1 // pred_fallthru
      _
    %v22 = vld [vmem:[%s0] sm:$0xff]
    %v23 = vld [vmem:[%s1] sm:$0xff]
    %v24 = vld [vmem:[%s1 + $0x8] sm:$0xff]
    %v25 = vld [vmem:[%s1 + $0x10] sm:$0xff]
    %v26 = vld [vmem:[%s1 + $0x18] sm:$0xff]
    %v27 = vld [vmem:[%s1 + $0x20] sm:$0xff]
    %v28 = vld [vmem:[%s1 + $0x28] sm:$0xff]
    %v29 = vld [vmem:[%s1 + $0x30] sm:$0xff]
    %v30 = vld [vmem:[%s1 + $0x38] sm:$0xff]
    %vm31 = vcmask 523264
    %v33 = vsel %vm31, %v22, 0
    %35 = vmatprep.subr.mxu0 0.0
    %36 = vmatpush1.msra.mxu0 %v23
    %37 = vmatprep.subr.mxu0 0.0
    %38 = vmatpush1.msra.mxu0 %v24
    %39 = vmatprep.subr.mxu0 0.0
    %40 = vmatpush1.msra.mxu0 %v25
    %41 = vmatprep.subr.mxu0 0.0
    %42 = vmatpush1.msra.mxu0 %v26
    %43 = vmatprep.subr.mxu0 0.0
    %44 = vmatpush1.msra.mxu0 %v27
    %45 = vmatprep.subr.mxu0 0.0
    %46 = vmatpush1.msra.mxu0 %v28
    %47 = vmatprep.subr.mxu0 0.0
    %48 = vmatpush1.msra.mxu0 %v29
    %49 = vmatprep.subr.mxu0 0.0
    %50 = vmatpush1.msra.mxu0 %v30
    %51 = vmatprep.subr.mxu0 0.0
    %52 = vmatpush1.msra.mxu0 0.0
    %53 = vmatprep.subr.mxu0 0.0
    %54 = vmatpush1.msra.mxu0 0.0
    %55 = vmatprep.subr.mxu0 0.0
    %56 = vmatpush1.msra.mxu0 0.0
    %57 = vmatprep.subr.mxu0 0.0
    %58 = vmatpush1.msra.mxu0 0.0
    %59 = vmatprep.subr.mxu0 0.0
    %60 = vmatpush1.msra.mxu0 0.0
    %61 = vmatprep.subr.mxu0 0.0
    %62 = vmatpush1.msra.mxu0 0.0
    %63 = vmatprep.subr.mxu0 0.0
    %64 = vmatpush1.msra.mxu0 0.0
    %65 = vmatprep.subr.mxu0 0.0
    %66 = vmatpush1.msra.mxu0 0.0
    %67 = vmatprep.subr.mxu0 0.0
    %68 = vmatpush1.msra.mxu0 0.0
    %69 = vmatprep.subr.mxu0 0.0
    %70 = vmatpush1.msra.mxu0 0.0
    %71 = vmatprep.subr.mxu0 0.0
    %72 = vmatpush1.msra.mxu0 0.0
    %73 = vmatprep.subr.mxu0 0.0
    %74 = vmatpush1.msra.mxu0 0.0
    %75 = vmatprep.subr.mxu0 0.0
    %76 = vmatpush1.msra.mxu0 0.0
    %77 = vmatprep.subr.mxu0 0.0
    %78 = vmatpush1.msra.mxu0 0.0
    %79 = vmatprep.subr.mxu0 0.0
    %80 = vmatpush1.msra.mxu0 0.0
    %81 = vmatprep.subr.mxu0 0.0
    %82 = vmatpush1.msra.mxu0 0.0
    %83 = vmatprep.subr.mxu0 0.0
    %84 = vmatpush1.msra.mxu0 0.0
    %85 = vmatprep.subr.mxu0 0.0
    %86 = vmatpush1.msra.mxu0 0.0
    %87 = vmatprep.subr.mxu0 0.0
    %88 = vmatpush1.msra.mxu0 0.0
    %89 = vmatprep.subr.mxu0 0.0
    %90 = vmatpush1.msra.mxu0 0.0
    %91 = vmatprep.subr.mxu0 0.0
    %92 = vmatpush1.msra.mxu0 0.0
    %93 = vmatprep.subr.mxu0 0.0
    %94 = vmatpush1.msra.mxu0 0.0
    %95 = vmatprep.subr.mxu0 0.0
    %96 = vmatpush1.msra.mxu0 0.0
    %97 = vmatprep.subr.mxu0 0.0
    %98 = vmatpush1.msra.mxu0 0.0
    %99 = vmatprep.mubr.f32.mxu0 0.0
    %100 = vmatmul.mubr.f32.gmra.mrb[0].mxu0 %v33
    %v101 = vpop.f32.mrb[0].mxu0
    %v102 = vadd.f32 0.0, %v101
    %v103 = vpop.f32.mrb[0].mxu0
    %104 = vdwg.mxu0
    %v105 = vld [vmem:[%s3] sm:$0xff]
    %v106 = vmul.f32 %v102, %v105
    %v107 = vld [vmem:[%s2] sm:$0xff]
    %v108 = vld [vmem:[%s2 + $0x8] sm:$0xff]
    %v109 = vld [vmem:[%s2 + $0x10] sm:$0xff]
    %v110 = vld [vmem:[%s2 + $0x18] sm:$0xff]
    %vm111 = vcmask 261120
    %v113 = vsel %vm111, %v106, 0
    %115 = vmatprep.subr.mxu0 0.0
    %116 = vmatpush1.msra.mxu0 %v107
    %117 = vmatprep.subr.mxu0 0.0
    %118 = vmatpush1.msra.mxu0 %v108
    %119 = vmatprep.subr.mxu0 0.0
    %120 = vmatpush1.msra.mxu0 %v109
    %121 = vmatprep.subr.mxu0 0.0
    %122 = vmatpush1.msra.mxu0 %v110
    %123 = vmatprep.subr.mxu0 0.0
    %124 = vmatpush1.msra.mxu0 0.0
    %125 = vmatprep.subr.mxu0 0.0
    %126 = vmatpush1.msra.mxu0 0.0
    %127 = vmatprep.subr.mxu0 0.0
    %128 = vmatpush1.msra.mxu0 0.0
    %129 = vmatprep.subr.mxu0 0.0
    %130 = vmatpush1.msra.mxu0 0.0
    %131 = vmatprep.subr.mxu0 0.0
    %132 = vmatpush1.msra.mxu0 0.0
    %133 = vmatprep.subr.mxu0 0.0
    %134 = vmatpush1.msra.mxu0 0.0
    %135 = vmatprep.subr.mxu0 0.0
    %136 = vmatpush1.msra.mxu0 0.0
    %137 = vmatprep.subr.mxu0 0.0
    %138 = vmatpush1.msra.mxu0 0.0
    %139 = vmatprep.subr.mxu0 0.0
    %140 = vmatpush1.msra.mxu0 0.0
    %141 = vmatprep.subr.mxu0 0.0
    %142 = vmatpush1.msra.mxu0 0.0
    %143 = vmatprep.subr.mxu0 0.0
    %144 = vmatpush1.msra.mxu0 0.0
    %145 = vmatprep.subr.mxu0 0.0
    %146 = vmatpush1.msra.mxu0 0.0
    %147 = vmatprep.subr.mxu0 0.0
    %148 = vmatpush1.msra.mxu0 0.0
    %149 = vmatprep.subr.mxu0 0.0
    %150 = vmatpush1.msra.mxu0 0.0
    %151 = vmatprep.subr.mxu0 0.0
    %152 = vmatpush1.msra.mxu0 0.0
    %153 = vmatprep.subr.mxu0 0.0
    %154 = vmatpush1.msra.mxu0 0.0
    %155 = vmatprep.subr.mxu0 0.0
    %156 = vmatpush1.msra.mxu0 0.0
    %157 = vmatprep.subr.mxu0 0.0
    %158 = vmatpush1.msra.mxu0 0.0
    %159 = vmatprep.subr.mxu0 0.0
    %160 = vmatpush1.msra.mxu0 0.0
    %161 = vmatprep.subr.mxu0 0.0
    %162 = vmatpush1.msra.mxu0 0.0
    %163 = vmatprep.subr.mxu0 0.0
    %164 = vmatpush1.msra.mxu0 0.0
    %165 = vmatprep.subr.mxu0 0.0
    %166 = vmatpush1.msra.mxu0 0.0
    %167 = vmatprep.subr.mxu0 0.0
    %168 = vmatpush1.msra.mxu0 0.0
    %169 = vmatprep.subr.mxu0 0.0
    %170 = vmatpush1.msra.mxu0 0.0
    %171 = vmatprep.subr.mxu0 0.0
    %172 = vmatpush1.msra.mxu0 0.0
    %173 = vmatprep.subr.mxu0 0.0
    %174 = vmatpush1.msra.mxu0 0.0
    %175 = vmatprep.subr.mxu0 0.0
    %176 = vmatpush1.msra.mxu0 0.0
    %177 = vmatprep.subr.mxu0 0.0
    %178 = vmatpush1.msra.mxu0 0.0
    %179 = vmatprep.mubr.f32.mxu0 0.0
    %180 = vmatmul.mubr.f32.gmra.mrb[0].mxu0 %v113
    %v181 = vpop.f32.mrb[0].mxu0
    %v182 = vadd.f32 0.0, %v181
    %v183 = vpop.f32.mrb[0].mxu0
    %184 = vdwg.mxu0
    %v185 = vadd.f32 %v22, %v182
    %186 = vst.msk [vmem:[#allocation2] sm:$0xff] %vm111, %v185
    %188 = vrot.lane.b32.xlu0 %v185, 96
    %v189 = vpop.permute.xlu0 %188
    %191 = vst.msk [vmem:[#allocation4] sm:$0xff] %vm111, %v189
    %v192 = vmul.f32 %v185, %v189
    %v193 = vsel %vm111, %v192, 0.0
    %194 = vadd.xlane.f32.xlu0 %v193
    %v195 = vpop.xlane.xlu0 %194
    %v196 = vmul.f32 %v185, %v185
    %v197 = vsel %vm111, %v196, 0.0
    %198 = vadd.xlane.f32.xlu0 %v197
    %v199 = vpop.xlane.xlu0 %198
    %v200 = vrsqrt.pop %v199
    %v201 = vmul.f32 %v199, %v200
    %vm202 = vcmp.eq.f32.partialorder %v199, inf
    %v203 = vsel %vm202, %v199, %v201
    %vm204 = vcmp.eq.f32.partialorder %v199, 0.0
    %v205 = vand.u32 %v199, 2147483648
    %v206 = vsel %vm204, %v205, %v203
    %208 = vrot.lane.b32.xlu0 %v196, 96
    %v209 = vpop.permute.xlu0 %208
    %v211 = vsel %vm111, %v209, 0.0
    %212 = vadd.xlane.f32.xlu0 %v211
    %v213 = vpop.xlane.xlu0 %212
    %v214 = vrsqrt.pop %v213
    %v215 = vmul.f32 %v213, %v214
    %vm216 = vcmp.eq.f32.partialorder %v213, inf
    %v217 = vsel %vm216, %v213, %v215
    %vm218 = vcmp.eq.f32.partialorder %v213, 0.0
    %v219 = vand.u32 %v213, 2147483648
    %v220 = vsel %vm218, %v219, %v217
    %v221 = vmul.f32 %v206, %v220
    %v222 = vmax.f32 %v221, 1e-08
    %v223 = vrcp.pop %v222
    %v224 = vmul.f32 %v195, %v223
    %225 = vxpose.xlu0.b32.start [1/16] %v224, 128
    %226 = vxpose.xlu0.b32.cont [2/16] 0.0, 128
    %227 = vxpose.xlu0.b32.cont [3/16] 0.0, 128
    %228 = vxpose.xlu0.b32.cont [4/16] 0.0, 128
    %229 = vxpose.xlu0.b32.cont [5/16] 0.0, 128
    %230 = vxpose.xlu0.b32.cont [6/16] 0.0, 128
    %231 = vxpose.xlu0.b32.cont [7/16] 0.0, 128
    %232 = vxpose.xlu0.b32.cont [8/16] 0.0, 128
    %233 = vxpose.xlu0.b32.cont [9/16] 0.0, 128
    %234 = vxpose.xlu0.b32.cont [10/16] 0.0, 128
    %235 = vxpose.xlu0.b32.cont [11/16] 0.0, 128
    %236 = vxpose.xlu0.b32.cont [12/16] 0.0, 128
    %237 = vxpose.xlu0.b32.cont [13/16] 0.0, 128
    %238 = vxpose.xlu0.b32.cont [14/16] 0.0, 128
    %239 = vxpose.xlu0.b32.cont [15/16] 0.0, 128
    %240 = vxpose.xlu0.b32.end [16/16] 0.0, 128
    %v241 = vpop.trf.xlu0
    %v242 = vpop.trf.xlu0
    %v243 = vpop.trf.xlu0
    %v244 = vpop.trf.xlu0
    %v245 = vpop.trf.xlu0
    %v246 = vpop.trf.xlu0
    %v247 = vpop.trf.xlu0
    %v248 = vpop.trf.xlu0
    %v249 = vpop.trf.xlu0
    %v250 = vpop.trf.xlu0
    %v251 = vpop.trf.xlu0
    %v252 = vpop.trf.xlu0
    %v253 = vpop.trf.xlu0
    %v254 = vpop.trf.xlu0
    %v255 = vpop.trf.xlu0
    %v256 = vpop.trf.xlu0
    %vm257 = vcmask 57344
    %258 = vst.msk [vmem:[#allocation6] sm:$0x1] %vm257, %v241
    // Predicated region
    $region18: #{tpu_custom_call.1} parent=1 // pred_check
      _
    $region19: #{tpu_custom_call.1} parent=1 // pred_check_branch
      %260 = sbr.rel (0) target = $region21
    $region20: #{tpu_custom_call.1} parent=1 // pred_region
      %s262 = ssub.s32 128, 128
      %263 = vsyncadd [#allocation3], %s262
      %s265 = sshll.u32 [#allocation2], 4
      %s266 = int_to_ptr.vmem [resolvable:$true] %s265
      %268 = dma.vmem_to_hbm [thread:$0]  %s266, 128, %s4, [#allocation3]
    $region21: #{tpu_custom_call.1} parent=1 // pred_fallthru
      _
    // Predicated region
    $region22: #{tpu_custom_call.1} parent=1 // pred_check
      _
    $region23: #{tpu_custom_call.1} parent=1 // pred_check_branch
      %270 = sbr.rel (0) target = $region25
    $region24: #{tpu_custom_call.1} parent=1 // pred_region
      %s272 = ssub.s32 128, 128
      %273 = vsyncadd [#allocation5], %s272
      %s275 = sshll.u32 [#allocation4], 4
      %s276 = int_to_ptr.vmem [resolvable:$true] %s275
      %278 = dma.vmem_to_hbm [thread:$0]  %s276, 128, %s5, [#allocation5]
    $region25: #{tpu_custom_call.1} parent=1 // pred_fallthru
      _
    // Predicated region
    $region26: #{tpu_custom_call.1} parent=1 // pred_check
      _
    $region27: #{tpu_custom_call.1} parent=1 // pred_check_branch
      %280 = sbr.rel (0) target = $region29
    $region28: #{tpu_custom_call.1} parent=1 // pred_region
      %s282 = ssub.s32 16, 16
      %283 = vsyncadd [#allocation5], %s282
      %s285 = sshll.u32 [#allocation6], 4
      %s286 = int_to_ptr.vmem [resolvable:$true] %s285
      %288 = dma.vmem_to_hbm [thread:$0]  %s286, 16, %s6, [#allocation5]
    $region29: #{tpu_custom_call.1} parent=1 // pred_fallthru
      _
    // Predicated region
    $region30: #{tpu_custom_call.1} parent=1 // pred_check
      _
    $region31: #{tpu_custom_call.1} parent=1 // pred_check_branch
      %290 = sbr.rel (0) target = $region33
    $region32: #{tpu_custom_call.1} parent=1 // pred_region
      %291 = dma.done [#allocation3], 128
    $region33: #{tpu_custom_call.1} parent=1 // pred_fallthru
      _
    // Predicated region
    $region34: #{tpu_custom_call.1} parent=1 // pred_check
      _
    $region35: #{tpu_custom_call.1} parent=1 // pred_check_branch
      %293 = sbr.rel (0) target = $region37
    $region36: #{tpu_custom_call.1} parent=1 // pred_region
      %294 = dma.done [#allocation5], 128
    $region37: #{tpu_custom_call.1} parent=1 // pred_fallthru
      _
    // Predicated region
    $region38: #{tpu_custom_call.1} parent=1 // pred_check
      _
    $region39: #{tpu_custom_call.1} parent=1 // pred_check_branch
      %296 = sbr.rel (0) target = $region41
    $region40: #{tpu_custom_call.1} parent=1 // pred_region
      %297 = dma.done [#allocation5], 16
    $region41: #{tpu_custom_call.1} parent=1 // pred_fallthru
      _
    %298 = vsyncpa [#allocation3], 1
    %299 = vsyncpa [#allocation5], 1

</llo_original>
